<compile_context>
chip_gen: v7x
topology: tpu7x:2x2x1
jax: 0.10.0
libtpu: 0.0.40
codegen_flags: <defaults>
</compile_context>

<pallas_src>
import jax
import jax.numpy as jnp
from jax.experimental import pallas as pl
from jax.experimental.pallas import tpu as pltpu


def _normalize_fma_kernel(scale_ref, bias_ref, x_ref, o_ref):
    # scale_ref / bias_ref : SMEM (C,) f32   fused per-channel constants
    # x_ref / o_ref        : (N*C, LANE_TILE) VMEM blocks; row r is channel r % C
    rows = x_ref.shape[0]
    num_ch = scale_ref.shape[0]

    # Per-row (sublane) channel id -> per-row scale/bias columns, built from an
    # iota + a few selects (C is tiny), all on the VPU; negligible vs. the FMA.
    ch = jax.lax.broadcasted_iota(jnp.int32, (rows, 1), 0) % num_ch
    s = jnp.zeros((rows, 1), jnp.float32)
    b = jnp.zeros((rows, 1), jnp.float32)
    for c in range(num_ch):
        sel = ch == c
        s = jnp.where(sel, scale_ref[c], s)
        b = jnp.where(sel, bias_ref[c], b)

    x = x_ref[...].astype(jnp.float32)      # supports uint8 / bf16 / f32 inputs
    o_ref[...] = (x * s + b).astype(o_ref.dtype)


def normalized_model_forward(x, mean_value, std_value, *,
                             out_dtype=jnp.float32,
                             lane_tile=None,
                             target_block_bytes=1 << 20):
    """Pallas equivalent of NormalizedModel.forward's normalization stage.

    x: (N, 3, H, W) image tensor (float32 / bf16 / uint8, values in [0, 255)).
    mean_value / std_value: length-3 sequences in [0, 1] scale, exactly like the
    PyTorch constructor (which multiplies them by 255).
    """
    N, C, H, W = x.shape
    assert C == 3, "NormalizedModel expects 3-channel NCHW input"
    HW = H * W
    rows = N * C

    # Fused constants (tiny, computed once in the wrapper):
    #   (x - mean*255) / (std*255)  ==  x * scale + bias
    scale = 1.0 / (jnp.asarray(std_value, jnp.float32) * 255.0)        # (C,)
    bias = -(jnp.asarray(mean_value, jnp.float32) * 255.0) * scale     # (C,)

    # Lane-dense 2-D view: rows = batch*channel (sublanes), cols = H*W (lanes).
    # This reshape is contiguous -> free in XLA.
    x2 = x.reshape(rows, HW)

    # Lane tile: multiple of 128 (or the full spatial extent), capped so
    # (in + out) blocks stay well under the scoped VMEM limit even with
    # double-buffering (v7x-safe), and small enough to give the grid a few
    # steps so the step-i+1 input DMA overlaps the step-i compute/store.
    itemsize = max(jnp.dtype(x.dtype).itemsize, jnp.dtype(out_dtype).itemsize)
    per_lane_bytes = rows * itemsize
    max_lanes = max(128, ((target_block_bytes // per_lane_bytes) // 128) * 128)
    if lane_tile is None:
        if HW <= 512:
            lane_tile = HW                                  # single full block
        else:
            want = (((HW + 3) // 4 + 127) // 128) * 128     # ~4 pipeline steps
            lane_tile = int(min(max_lanes, max(512, want)))
    grid = (pl.cdiv(HW, lane_tile),)

    y2 = pl.pallas_call(
        _normalize_fma_kernel,
        out_shape=jax.ShapeDtypeStruct((rows, HW), out_dtype),
        grid_spec=pltpu.PrefetchScalarGridSpec(
            num_scalar_prefetch=2,          # scale, bias -> SMEM
            grid=grid,
            in_specs=[
                pl.BlockSpec((rows, lane_tile), lambda j, s, b: (0, j)),
            ],
            out_specs=pl.BlockSpec((rows, lane_tile), lambda j, s, b: (0, j)),
        ),
        compiler_params=pltpu.CompilerParams(
            dimension_semantics=("parallel",),
        ),
    )(scale, bias, x2)

    y = y2.reshape(N, C, H, W)

    # TODO(synk): self.module is an externally-injected submodule (the wrapped
    # mmpose network); NormalizedModel defines no architecture for it, so it is
    # treated as identity here. (Best case: fold scale/bias into that network's
    # first conv and skip this extra HBM pass entirely.)
    return y


if __name__ == "__main__":
    key = jax.random.PRNGKey(0)

    # Standard ImageNet mean/std (what mmpose configs pass into NormalizedModel).
    mean_value = [0.485, 0.456, 0.406]
    std_value = [0.229, 0.224, 0.225]

    def reference(x):
        mean_ref = (jnp.asarray(mean_value, jnp.float32) * 255.0).reshape(1, 3, 1, 1)
        std_ref = (jnp.asarray(std_value, jnp.float32) * 255.0).reshape(1, 3, 1, 1)
        return (x - mean_ref) / std_ref

    # --- small shape, single-block path -------------------------------------
    N, C, H, W = 2, 3, 16, 16
    x = jax.random.uniform(key, (N, C, H, W), dtype=jnp.float32) * 255.0
    y = jax.block_until_ready(normalized_model_forward(x, mean_value, std_value))
    y_ref = reference(x)
    assert y.shape == (N, C, H, W) and y.dtype == jnp.float32
    assert jnp.allclose(y, y_ref, rtol=1e-5, atol=1e-5), float(jnp.max(jnp.abs(y - y_ref)))

    # --- slightly larger shape, exercises the multi-step lane-tiled path -----
    x2 = jax.random.uniform(jax.random.PRNGKey(1), (2, 3, 32, 32), dtype=jnp.float32) * 255.0
    y2 = jax.block_until_ready(normalized_model_forward(x2, mean_value, std_value))
    assert jnp.allclose(y2, reference(x2), rtol=1e-5, atol=1e-5)

    # --- explicit tiny lane tile (forces grid > 1 and a partial-block check) -
    y3 = jax.block_until_ready(
        normalized_model_forward(x2, mean_value, std_value, lane_tile=384))
    assert jnp.allclose(y3, reference(x2), rtol=1e-5, atol=1e-5)

    print("KERNEL_OK")
</pallas_src>

<mosaic_0001>
module attributes {stable_mosaic.version = 11 : i64} {
  func.func @_normalize_fma_kernel(%arg0: i32, %arg1: memref<3xf32, #tpu.memory_space<smem>>, %arg2: memref<3xf32, #tpu.memory_space<smem>>, %arg3: memref<6x256xf32, #tpu.memory_space<vmem>>, %arg4: memref<6x256xf32, #tpu.memory_space<vmem>>) attributes {dimension_semantics = [#tpu.dimension_semantics<parallel>], iteration_bounds = array<i64: 1>, scalar_prefetch = 2 : i64, scratch_operands = 0 : i64, tpu.core_type = #tpu.core_type<tc>, window_params = [{transform_indices = @transform_0, window_bounds = array<i64: 6, 256>}, {transform_indices = @transform_1, window_bounds = array<i64: 6, 256>}]} {
    %0 = tpu.iota {dimensions = array<i32: 0>} : vector<6x1xi32>
    %c3_i32 = arith.constant 3 : i32
    %c0_i32 = arith.constant 0 : i32
    %1 = arith.cmpi eq, %c3_i32, %c0_i32 : i32
    %c1_i32 = arith.constant 1 : i32
    %2 = arith.select %1, %c1_i32, %c3_i32 : i32
    %3 = vector.broadcast %2 : i32 to vector<6x1xi32>
    %4 = arith.remsi %0, %3 : vector<6x1xi32>
    %c0_i32_0 = arith.constant 0 : i32
    %5 = vector.broadcast %c0_i32_0 : i32 to vector<6x1xi32>
    %6 = arith.cmpi ne, %4, %5 : vector<6x1xi32>
    %c0_i32_1 = arith.constant 0 : i32
    %7 = vector.broadcast %c0_i32_1 : i32 to vector<6x1xi32>
    %8 = arith.cmpi slt, %4, %7 : vector<6x1xi32>
    %c0_i32_2 = arith.constant 0 : i32
    %9 = arith.cmpi slt, %2, %c0_i32_2 : i32
    %10 = vector.broadcast %9 : i1 to vector<6x1xi1>
    %11 = vector.broadcast %10 : vector<6x1xi1> to vector<6x1xi1>
    %12 = arith.xori %8, %11 : vector<6x1xi1>
    %13 = arith.andi %12, %6 : vector<6x1xi1>
    %14 = vector.broadcast %2 : i32 to vector<6x1xi32>
    %15 = arith.addi %4, %14 : vector<6x1xi32>
    %16 = arith.select %13, %15, %4 : vector<6x1xi1>, vector<6x1xi32>
    %cst = arith.constant 0.000000e+00 : f32
    %17 = vector.broadcast %cst : f32 to vector<6x1xf32>
    %cst_3 = arith.constant 0.000000e+00 : f32
    %18 = vector.broadcast %cst_3 : f32 to vector<6x1xf32>
    %c0_i32_4 = arith.constant 0 : i32
    %19 = vector.broadcast %c0_i32_4 : i32 to vector<6x1xi32>
    %20 = arith.cmpi eq, %16, %19 : vector<6x1xi32>
    %c0 = arith.constant 0 : index
    %21 = memref.load %arg1[%c0] : memref<3xf32, #tpu.memory_space<smem>>
    %22 = vector.broadcast %21 : f32 to vector<6x1xf32>
    %23 = arith.select %20, %22, %17 : vector<6x1xi1>, vector<6x1xf32>
    %c0_5 = arith.constant 0 : index
    %24 = memref.load %arg2[%c0_5] : memref<3xf32, #tpu.memory_space<smem>>
    %25 = vector.broadcast %24 : f32 to vector<6x1xf32>
    %26 = arith.select %20, %25, %18 : vector<6x1xi1>, vector<6x1xf32>
    %c1_i32_6 = arith.constant 1 : i32
    %27 = vector.broadcast %c1_i32_6 : i32 to vector<6x1xi32>
    %28 = arith.cmpi eq, %16, %27 : vector<6x1xi32>
    %c1 = arith.constant 1 : index
    %29 = memref.load %arg1[%c1] : memref<3xf32, #tpu.memory_space<smem>>
    %30 = vector.broadcast %29 : f32 to vector<6x1xf32>
    %31 = arith.select %28, %30, %23 : vector<6x1xi1>, vector<6x1xf32>
    %c1_7 = arith.constant 1 : index
    %32 = memref.load %arg2[%c1_7] : memref<3xf32, #tpu.memory_space<smem>>
    %33 = vector.broadcast %32 : f32 to vector<6x1xf32>
    %34 = arith.select %28, %33, %26 : vector<6x1xi1>, vector<6x1xf32>
    %c2_i32 = arith.constant 2 : i32
    %35 = vector.broadcast %c2_i32 : i32 to vector<6x1xi32>
    %36 = arith.cmpi eq, %16, %35 : vector<6x1xi32>
    %c2 = arith.constant 2 : index
    %37 = memref.load %arg1[%c2] : memref<3xf32, #tpu.memory_space<smem>>
    %38 = vector.broadcast %37 : f32 to vector<6x1xf32>
    %39 = arith.select %36, %38, %31 : vector<6x1xi1>, vector<6x1xf32>
    %c2_8 = arith.constant 2 : index
    %40 = memref.load %arg2[%c2_8] : memref<3xf32, #tpu.memory_space<smem>>
    %41 = vector.broadcast %40 : f32 to vector<6x1xf32>
    %42 = arith.select %36, %41, %34 : vector<6x1xi1>, vector<6x1xf32>
    %c0_9 = arith.constant 0 : index
    %c0_10 = arith.constant 0 : index
    %43 = vector.load %arg3[%c0_9, %c0_10] : memref<6x256xf32, #tpu.memory_space<vmem>>, vector<6x256xf32>
    %44 = vector.broadcast %39 : vector<6x1xf32> to vector<6x256xf32>
    %45 = arith.mulf %43, %44 : vector<6x256xf32>
    %46 = vector.broadcast %42 : vector<6x1xf32> to vector<6x256xf32>
    %47 = arith.addf %45, %46 : vector<6x256xf32>
    %c0_11 = arith.constant 0 : index
    %c0_12 = arith.constant 0 : index
    %48 = vector.load %arg4[%c0_11, %c0_12] : memref<6x256xf32, #tpu.memory_space<vmem>>, vector<6x256xf32>
    tpu.vector_store %arg4[%c0_11, %c0_12], %47 {strides = array<i32>} : memref<6x256xf32, #tpu.memory_space<vmem>>, vector<6x256xf32>,
    return
  }
  func.func @transform_0(%arg0: i32, %arg1: memref<3xf32, #tpu.memory_space<smem>>, %arg2: memref<3xf32, #tpu.memory_space<smem>>) -> (i32, i32) {
    %c0_i32 = arith.constant 0 : i32
    %c0_i32_0 = arith.constant 0 : i32
    return %c0_i32, %arg0 : i32, i32
  }
  func.func @transform_1(%arg0: i32, %arg1: memref<3xf32, #tpu.memory_space<smem>>, %arg2: memref<3xf32, #tpu.memory_space<smem>>) -> (i32, i32) {
    %c0_i32 = arith.constant 0 : i32
    %c0_i32_0 = arith.constant 0 : i32
    return %c0_i32, %arg0 : i32, i32
  }
}

</mosaic_0001>

<llo_original>
// kernel: tpu_custom_call.1
$region0: #{tpu_custom_call.1}
  #allocation0 [shape = 'u32[]', space=smem, size = 0x4, offset = 0x4, fixed_abs, tag = 'smem constant byte address 0x4 - core index']
  #allocation1 [shape = 'u32[144,128]{1,0:T(1,128)}', space=vmem, size = 0x12000, scoped, tag = 'internal scratch']
  #allocation2 [shape = 's32[1]{0}', space=sflag, size = 0x4, scoped, tag = 'scoped memory for tpu_custom_call.1']
  #allocation3 [shape = 'u8[512]{0}', space=smem, size = 0x200, scoped, tag = 'prefetched SMEM operand 0']
  #allocation4 [shape = 'u8[512]{0}', space=smem, size = 0x200, scoped, tag = 'prefetched SMEM operand 1']
  %s0 = inlined_call_operand.hbm [shape: f32[3], index: 0, kind: input, shape index: {}]
  %s1 = inlined_call_operand.vmem [shape: f32[3], index: 1, kind: input, shape index: {}]
  %s2 = inlined_call_operand.hbm [shape: f32[6,256], index: 2, kind: input, shape index: {}]
  %s3 = inlined_call_operand.hbm [shape: f32[6,256], index: 3, kind: output, shape index: {}]
  %s4 = sld [smem:[#allocation0]]
  $region18: #{tpu_custom_call.1} parent=0
    _
  %s6 = ssub.s32 1, %s4
  %s7 = scalar_select 0, %s6, %s4
  %9 = dma.hbm_to_smem %s0, 16, [#allocation3], [#allocation2]
  %s10 = sshll.u32 %s1, 4
  %s11 = int_to_ptr.vmem [resolvable:$true] %s10
  %13 = dma.vmem_to_smem %s11, 16, [#allocation4], [#allocation2]
  %14 = dma.done [#allocation2], 32
  %15 = sfence
  $region1: #{tpu_custom_call.1} parent=0
    #allocation5 [shape = 'u8[8192]{0}', space=vmem, size = 0x2000, scoped, tag = 'input window, operand 2, single buffered']
    #allocation6 [shape = 's32[1]{0}', space=sflag, size = 0x4, scoped, tag = 'scoped memory for tpu_custom_call.1']
    #allocation7 [shape = 's32[1]{0}', space=sflag, size = 0x4, scoped, tag = 'scoped memory for tpu_custom_call.1']
    #allocation8 [shape = 'u8[8192]{0}', space=vmem, size = 0x2000, scoped, tag = 'output window, operand 0, single buffered']
    %16 = vsyncpa [#allocation6], 0
    %17 = vsyncpa [#allocation7], 0
    // Predicated region
    $region2: #{tpu_custom_call.1} parent=1 // pred_check
      _
    $region3: #{tpu_custom_call.1} parent=1 // pred_check_branch
      %19 = sbr.rel (0) target = $region5
    $region4: #{tpu_custom_call.1} parent=1 // pred_region
      %s21 = ssub.s32 256, 256
      %22 = vsyncadd [#allocation6], %s21
      %s24 = sshll.u32 [#allocation5], 4
      %s25 = int_to_ptr.vmem [resolvable:$true] %s24
      %27 = dma.hbm_to_vmem [thread:$0]  %s2, 256, %s25, [#allocation6]
    $region5: #{tpu_custom_call.1} parent=1 // pred_fallthru
      _
    // Predicated region
    $region6: #{tpu_custom_call.1} parent=1 // pred_check
      _
    $region7: #{tpu_custom_call.1} parent=1 // pred_check_branch
      %29 = sbr.rel (0) target = $region9
    $region8: #{tpu_custom_call.1} parent=1 // pred_region
      %30 = dma.done [#allocation6], 256
    $region9: #{tpu_custom_call.1} parent=1 // pred_fallthru
      _
    %v31 = vlaneseq
    %v32 = vshrl.u32 %v31, 7
    %vm33 = vcmp.lt.s32.totalorder %v32, 0
    %v34 = vsub.s32 0, %v32
    %v35 = vsel %vm33, %v34, %v32
    %v36 = vmul.u32.u64.compose %v35, 2863311531
    %v37 = vextract.low.u32 %v36
    %v38 = vextract.high.u32 %v36
    %v39 = vshrl.u32 %v38, 1
    %v40 = vmul.u32 %v39, 3
    %v41 = vsub.s32 %v35, %v40
    %v42 = vsub.s32 0, %v41
    %v43 = vsel %vm33, %v42, %v41
    %vm44 = vcmp.ne.s32.totalorder %v43, 0
    %vm45 = vcmp.lt.s32.totalorder %v43, 0
    %vm46 = vmand %vm45, %vm44
    %v47 = vadd.s32 %v43, 3
    %v48 = vsel %vm46, %v47, %v43
    %vm49 = vcmp.eq.s32.totalorder %v48, 0
    %s50 = sld [smem:[#allocation3]]
    %v51 = vstv %s50
    %v52 = vsel %vm49, %v51, 0.0
    %s53 = sld [smem:[#allocation4]]
    %v54 = vstv %s53
    %v55 = vsel %vm49, %v54, 0.0
    %vm56 = vcmp.eq.s32.totalorder %v48, 1
    %s57 = sld [smem:[#allocation3 + $0x1]]
    %v58 = vstv %s57
    %v59 = vsel %vm56, %v58, %v52
    %s60 = sld [smem:[#allocation4 + $0x1]]
    %v61 = vstv %s60
    %v62 = vsel %vm56, %v61, %v55
    %vm63 = vcmp.eq.s32.totalorder %v48, 2
    %s64 = sld [smem:[#allocation3 + $0x2]]
    %v65 = vstv %s64
    %v66 = vsel %vm63, %v65, %v59
    %s67 = sld [smem:[#allocation4 + $0x2]]
    %v68 = vstv %s67
    %v69 = vsel %vm63, %v68, %v62
    %v70 = vld [vmem:[#allocation5] sm:$0x3f]
    %v71 = vld [vmem:[#allocation5 + $0x8] sm:$0x3f]
    %v72 = vmul.f32 %v70, %v66
    %v73 = vmul.f32 %v71, %v66
    %v74 = vadd.f32 %v72, %v69
    %v75 = vadd.f32 %v73, %v69
    %76 = vst [vmem:[#allocation8] sm:$0x3f] %v74
    %77 = vst [vmem:[#allocation8 + $0x8] sm:$0x3f] %v75
    // Predicated region
    $region10: #{tpu_custom_call.1} parent=1 // pred_check
      _
    $region11: #{tpu_custom_call.1} parent=1 // pred_check_branch
      %79 = sbr.rel (0) target = $region13
    $region12: #{tpu_custom_call.1} parent=1 // pred_region
      %s81 = ssub.s32 256, 256
      %82 = vsyncadd [#allocation7], %s81
      %s84 = sshll.u32 [#allocation8], 4
      %s85 = int_to_ptr.vmem [resolvable:$true] %s84
      %87 = dma.vmem_to_hbm [thread:$0]  %s85, 256, %s3, [#allocation7]
    $region13: #{tpu_custom_call.1} parent=1 // pred_fallthru
      _
    // Predicated region
    $region14: #{tpu_custom_call.1} parent=1 // pred_check
      _
    $region15: #{tpu_custom_call.1} parent=1 // pred_check_branch
      %89 = sbr.rel (0) target = $region17
    $region16: #{tpu_custom_call.1} parent=1 // pred_region
      %90 = dma.done [#allocation7], 256
    $region17: #{tpu_custom_call.1} parent=1 // pred_fallthru
      _
    %91 = vsyncpa [#allocation6], 1
    %92 = vsyncpa [#allocation7], 1

</llo_original>
